<compile_context>
chip_gen: v7x
topology: tpu7x:2x2x1
jax: 0.10.0
libtpu: 0.0.40
codegen_flags: <defaults>
</compile_context>

<pallas_src>
import jax
import jax.numpy as jnp
from jax.experimental import pallas as pl
from jax.experimental.pallas import tpu as pltpu


def _round_up(x: int, m: int) -> int:
    return (x + m - 1) // m * m


def _tpu_config():
    """Returns (physical VMEM bytes per core, #TensorCores a 'parallel' axis can use)."""
    vmem_bytes = 64 * 1024 * 1024          # conservative default (v7x per-TC size)
    num_cores = 1
    try:
        info = pltpu.get_tpu_info()
        v = getattr(info, "vmem_capacity_bytes", None)
        if v:
            vmem_bytes = int(v)
        for attr in ("num_cores", "tensorcore_count", "num_tensorcores", "cores_per_chip"):
            c = getattr(info, attr, None)
            if c:
                num_cores = int(c)
                break
    except Exception:
        pass
    if num_cores == 1:
        try:
            kind = jax.devices()[0].device_kind.lower()
            # v7x has 2 TCs/chip; v4/v5p megacore also shards "parallel" grid axes.
            if any(s in kind for s in ("v7", "v4", "v5p")):
                num_cores = 2
        except Exception:
            pass
    return vmem_bytes, num_cores


def _pick_batch_tile(B, d1, d2, dout, itemsize, resident_bytes, vmem_bytes, num_cores):
    sublane = 8 * max(1, 4 // itemsize)    # 8 (f32) / 16 (bf16) / 32 (int8, fp8)
    # ~half the per-core VMEM (capped at 48 MiB), minus the double-buffered
    # resident weights; the remainder is for the double-buffered x1/x2/out tiles.
    budget = min(vmem_bytes // 2, 48 * 1024 * 1024) - 2 * resident_bytes
    budget = max(budget, 2 * 1024 * 1024)
    row_bytes = 2 * itemsize * (
        _round_up(d1, 128) + _round_up(d2, 128) + _round_up(dout, 128))
    tb = min(budget // row_bytes, 1024)
    if num_cores >= 2:
        # Give every TensorCore at least ~2 grid steps when the batch allows it.
        per_step = _round_up(max(1, -(-B // (2 * num_cores))), sublane)
        tb = min(tb, max(sublane, per_step))
    tb = max(sublane, (tb // sublane) * sublane)
    if tb >= B:
        tb = B                              # single full-batch tile (any B is legal)
    return int(tb)


def _make_gated_kernel(expand_x1: bool, expand_x2: bool, dout: int):
    """Kernel variant; the PyTorch shape-check `if`s are resolved at trace time."""

    def kernel(x1_ref, x2_ref, *refs):
        x1 = x1_ref[...]                                    # native dtype MXU operand
        if expand_x1:
            # Fused gate+expand: one MXU pass of x1 against [Wg^T | We^T].
            wcat_ref, bcat_ref, *rest = refs
            za = jnp.dot(x1, wcat_ref[...],
                         preferred_element_type=jnp.float32) + bcat_ref[...]
            z = za[:, :dout]
            a = za[:, dout:]
        else:
            wg_ref, bg_ref, *rest = refs
            z = jnp.dot(x1, wg_ref[...],
                        preferred_element_type=jnp.float32) + bg_ref[...]
            a = x1.astype(jnp.float32)                      # blend stays in f32
        if expand_x2:
            we_ref, be_ref, o_ref = rest
            b = jnp.dot(x2_ref[...], we_ref[...],
                        preferred_element_type=jnp.float32) + be_ref[...]
        else:
            (o_ref,) = rest
            b = x2_ref[...].astype(jnp.float32)
        # sigmoid: exp and approximate reciprocal both ride the EUP slot.
        gate = pl.reciprocal(1.0 + jnp.exp(-z), approx=True)
        o_ref[...] = (gate * a + (1.0 - gate) * b).astype(o_ref.dtype)

    return kernel


def prepare_gated_params(gate_w, gate_b, expand_w, expand_b, *, x2_dim=None):
    """One-time parameter preparation (hoisted out of the per-call path).

    gate_w/expand_w: (Dout, Din) PyTorch layout; gate_b/expand_b: (Dout,).
    Weights keep their native dtype; biases are stored as f32 rows.
    """
    dout, din = gate_w.shape
    assert expand_w.shape == (dout, din)
    d2 = din if x2_dim is None else int(x2_dim)
    expand_x1 = din != dout
    expand_x2 = d2 != dout
    if expand_x2:
        assert d2 == din, "expand Linear expects x2 features == input_dim"

    bg = gate_b.reshape(1, dout).astype(jnp.float32)
    be = expand_b.reshape(1, dout).astype(jnp.float32)

    params = dict(din=din, d2=d2, dout=dout,
                  expand_x1=expand_x1, expand_x2=expand_x2)
    if expand_x1:
        params["w_cat"] = jnp.concatenate([gate_w.T, expand_w.T], axis=1)  # (Din, 2*Dout)
        params["b_cat"] = jnp.concatenate([bg, be], axis=1)                # (1, 2*Dout)
    else:
        params["wg_t"] = gate_w.T                                          # (Din, Dout)
        params["bg"] = bg
    if expand_x2:
        params["we_t"] = expand_w.T                                        # (Din, Dout)
        params["be"] = be
    return params


def gated_mechanism(x1, x2, params, *, batch_tile=None):
    """GatedMechanism forward.  x1: (B, Din), x2: (B, Din|Dout) -> (B, Dout)."""
    B, d1 = x1.shape
    b2, d2 = x2.shape
    assert B == b2, "x1 and x2 must share the batch dimension"
    assert d1 == params["din"]
    assert d2 == params["d2"]
    dout = params["dout"]
    expand_x1, expand_x2 = params["expand_x1"], params["expand_x2"]

    weight_ops, weight_specs = [], []
    resident_bytes = 0

    def _add_resident(arr):
        nonlocal resident_bytes
        weight_ops.append(arr)
        weight_specs.append(pl.BlockSpec(arr.shape, lambda i: (0, 0)))  # resident in VMEM
        resident_bytes += int(arr.size) * arr.dtype.itemsize

    if expand_x1:
        _add_resident(params["w_cat"])
        _add_resident(params["b_cat"])
    else:
        _add_resident(params["wg_t"])
        _add_resident(params["bg"])
    if expand_x2:
        _add_resident(params["we_t"])
        _add_resident(params["be"])
    # NOTE: the constant-index weight specs still get Pallas' default 2 pipeline
    # buffers; single-buffering them (pipeline_mode=pl.Buffered(1)) was skipped
    # for compatibility — the VMEM budget below already accounts for 2x residency.

    vmem_bytes, num_cores = _tpu_config()
    itemsize = jnp.dtype(x1.dtype).itemsize
    if batch_tile is None:
        tb = _pick_batch_tile(B, d1, d2, dout, itemsize, resident_bytes,
                              vmem_bytes, num_cores)
    else:
        sublane = 8 * max(1, 4 // itemsize)
        tb = min(int(batch_tile), B)
        if tb < B:
            tb = max(sublane, (tb // sublane) * sublane)

    grid = (pl.cdiv(B, tb),)   # partial last block handled by Pallas (no pad / out slice)
    vmem_limit = max(32 * 1024 * 1024,
                     min((vmem_bytes * 3) // 4, 96 * 1024 * 1024))

    # TODO(synk): for deployed models with Dout < 128, consider zero-padding the
    # weights/bias out to a 128-lane Dout (unmasked lane-dense stores) and slicing
    # outside — measure first, since it also inflates output HBM bytes.
    out = pl.pallas_call(
        _make_gated_kernel(expand_x1, expand_x2, dout),
        out_shape=jax.ShapeDtypeStruct((B, dout), x1.dtype),
        grid_spec=pltpu.PrefetchScalarGridSpec(
            num_scalar_prefetch=0,
            grid=grid,
            in_specs=[pl.BlockSpec((tb, d1), lambda i: (i, 0)),   # x1 batch tile
                      pl.BlockSpec((tb, d2), lambda i: (i, 0))]   # x2 batch tile
                     + weight_specs,
            out_specs=pl.BlockSpec((tb, dout), lambda i: (i, 0)),
        ),
        compiler_params=pltpu.CompilerParams(
            dimension_semantics=("parallel",),
            vmem_limit_bytes=int(vmem_limit),
        ),
    )(x1, x2, *weight_ops)
    return out


if __name__ == "__main__":
    key = jax.random.PRNGKey(0)
    k1, k2, k3, k4, k5, k6 = jax.random.split(key, 6)

    def reference(x1, x2, gate_w, gate_b, expand_w, expand_b):
        g = jax.nn.sigmoid(x1 @ gate_w.T + gate_b)
        a = x1 @ expand_w.T + expand_b if x1.shape[1] != gate_w.shape[0] else x1
        b = x2 @ expand_w.T + expand_b if x2.shape[1] != gate_w.shape[0] else x2
        return g * a + (1.0 - g) * b

    # Case 1: input_dim != output_dim -> expand() applied to both x1 and x2.
    B, Din, Dout = 16, 32, 64
    x1 = jax.random.normal(k1, (B, Din), jnp.float32)
    x2 = jax.random.normal(k2, (B, Din), jnp.float32)
    gate_w = 0.1 * jax.random.normal(k3, (Dout, Din), jnp.float32)
    gate_b = 0.1 * jax.random.normal(k4, (Dout,), jnp.float32)
    expand_w = 0.1 * jax.random.normal(k5, (Dout, Din), jnp.float32)
    expand_b = 0.1 * jax.random.normal(k6, (Dout,), jnp.float32)

    params = prepare_gated_params(gate_w, gate_b, expand_w, expand_b)
    out = jax.block_until_ready(gated_mechanism(x1, x2, params))
    ref = reference(x1, x2, gate_w, gate_b, expand_w, expand_b)
    assert out.shape == (B, Dout)
    assert jnp.allclose(out, ref, atol=5e-3, rtol=5e-3), float(jnp.max(jnp.abs(out - ref)))

    # Case 2: input_dim == output_dim -> no expand; expand weights are not passed.
    D = 32
    y1 = jax.random.normal(k1, (B, D), jnp.float32)
    y2 = jax.random.normal(k2, (B, D), jnp.float32)
    gw = 0.1 * jax.random.normal(k3, (D, D), jnp.float32)
    gb = 0.1 * jax.random.normal(k4, (D,), jnp.float32)
    ew = 0.1 * jax.random.normal(k5, (D, D), jnp.float32)
    eb = 0.1 * jax.random.normal(k6, (D,), jnp.float32)
    params2 = prepare_gated_params(gw, gb, ew, eb)
    out2 = jax.block_until_ready(gated_mechanism(y1, y2, params2))
    ref2 = reference(y1, y2, gw, gb, ew, eb)
    assert out2.shape == (B, D)
    assert jnp.allclose(out2, ref2, atol=5e-3, rtol=5e-3), float(jnp.max(jnp.abs(out2 - ref2)))

    # Case 3: ragged batch with a forced tile -> partial last block, no jnp.pad.
    B3 = 20
    z1 = jax.random.normal(k1, (B3, Din), jnp.float32)
    z2 = jax.random.normal(k2, (B3, Din), jnp.float32)
    out3 = jax.block_until_ready(gated_mechanism(z1, z2, params, batch_tile=16))
    ref3 = reference(z1, z2, gate_w, gate_b, expand_w, expand_b)
    assert out3.shape == (B3, Dout)
    assert jnp.allclose(out3, ref3, atol=5e-3, rtol=5e-3), float(jnp.max(jnp.abs(out3 - ref3)))

    print("KERNEL_OK")
</pallas_src>

<mosaic_0001>
module attributes {stable_mosaic.version = 11 : i64} {
  func.func @kernel(%arg0: i32, %arg1: memref<16x32xf32, #tpu.memory_space<vmem>>, %arg2: memref<16x32xf32, #tpu.memory_space<vmem>>, %arg3: memref<32x128xf32, #tpu.memory_space<vmem>>, %arg4: memref<1x128xf32, #tpu.memory_space<vmem>>, %arg5: memref<32x64xf32, #tpu.memory_space<vmem>>, %arg6: memref<1x64xf32, #tpu.memory_space<vmem>>, %arg7: memref<16x64xf32, #tpu.memory_space<vmem>>) attributes {dimension_semantics = [#tpu.dimension_semantics<parallel>], iteration_bounds = array<i64: 1>, scalar_prefetch = 0 : i64, scratch_operands = 0 : i64, tpu.core_type = #tpu.core_type<tc>, window_params = [{transform_indices = @transform_0, window_bounds = array<i64: 16, 32>}, {transform_indices = @transform_1, window_bounds = array<i64: 16, 32>}, {pipeline_mode = #tpu.pipeline_mode<synchronous>, transform_indices = @transform_2, window_bounds = array<i64: 32, 128>}, {pipeline_mode = #tpu.pipeline_mode<synchronous>, transform_indices = @transform_3, window_bounds = array<i64: 1, 128>}, {pipeline_mode = #tpu.pipeline_mode<synchronous>, transform_indices = @transform_4, window_bounds = array<i64: 32, 64>}, {pipeline_mode = #tpu.pipeline_mode<synchronous>, transform_indices = @transform_5, window_bounds = array<i64: 1, 64>}, {transform_indices = @transform_6, window_bounds = array<i64: 16, 64>}]} {
    %c0 = arith.constant 0 : index
    %c0_0 = arith.constant 0 : index
    %0 = vector.load %arg1[%c0, %c0_0] : memref<16x32xf32, #tpu.memory_space<vmem>>, vector<16x32xf32>
    %c0_1 = arith.constant 0 : index
    %c0_2 = arith.constant 0 : index
    %1 = vector.load %arg3[%c0_1, %c0_2] : memref<32x128xf32, #tpu.memory_space<vmem>>, vector<32x128xf32>
    %cst = arith.constant dense<0.000000e+00> : vector<16x128xf32>
    %2 = tpu.matmul %0, %1, %cst {dimension_numbers = #tpu.dot_dimension_numbers<[1], [0], [0], [1], [0, 0, 1, 1], [], []>} : vector<16x32xf32>, vector<32x128xf32>, vector<16x128xf32> -> vector<16x128xf32>
    %c0_3 = arith.constant 0 : index
    %c0_4 = arith.constant 0 : index
    %3 = vector.load %arg4[%c0_3, %c0_4] : memref<1x128xf32, #tpu.memory_space<vmem>>, vector<1x128xf32>
    %4 = vector.broadcast %3 : vector<1x128xf32> to vector<16x128xf32>
    %5 = arith.addf %2, %4 : vector<16x128xf32>
    %6 = vector.extract_strided_slice %5 {offsets = [0, 0], sizes = [16, 64], strides = [1, 1]} : vector<16x128xf32> to vector<16x64xf32>
    %7 = vector.extract_strided_slice %5 {offsets = [0, 64], sizes = [16, 64], strides = [1, 1]} : vector<16x128xf32> to vector<16x64xf32>
    %c0_5 = arith.constant 0 : index
    %c0_6 = arith.constant 0 : index
    %8 = vector.load %arg2[%c0_5, %c0_6] : memref<16x32xf32, #tpu.memory_space<vmem>>, vector<16x32xf32>
    %c0_7 = arith.constant 0 : index
    %c0_8 = arith.constant 0 : index
    %9 = vector.load %arg5[%c0_7, %c0_8] : memref<32x64xf32, #tpu.memory_space<vmem>>, vector<32x64xf32>
    %cst_9 = arith.constant dense<0.000000e+00> : vector<16x64xf32>
    %10 = tpu.matmul %8, %9, %cst_9 {dimension_numbers = #tpu.dot_dimension_numbers<[1], [0], [0], [1], [0, 0, 1, 1], [], []>} : vector<16x32xf32>, vector<32x64xf32>, vector<16x64xf32> -> vector<16x64xf32>
    %c0_10 = arith.constant 0 : index
    %c0_11 = arith.constant 0 : index
    %11 = vector.load %arg6[%c0_10, %c0_11] : memref<1x64xf32, #tpu.memory_space<vmem>>, vector<1x64xf32>
    %12 = vector.broadcast %11 : vector<1x64xf32> to vector<16x64xf32>
    %13 = arith.addf %10, %12 : vector<16x64xf32>
    %cst_12 = arith.constant 0.000000e+00 : f32
    %14 = vector.broadcast %cst_12 : f32 to vector<16x64xf32>
    %15 = arith.subf %14, %6 : vector<16x64xf32>
    %16 = math.exp %15 : vector<16x64xf32>
    %cst_13 = arith.constant 1.000000e+00 : f32
    %17 = vector.broadcast %cst_13 : f32 to vector<16x64xf32>
    %18 = arith.addf %17, %16 : vector<16x64xf32>
    %19 = tpu.reciprocal %18 {approx = true} : vector<16x64xf32> -> vector<16x64xf32>
    %20 = arith.mulf %19, %7 : vector<16x64xf32>
    %cst_14 = arith.constant 1.000000e+00 : f32
    %21 = vector.broadcast %cst_14 : f32 to vector<16x64xf32>
    %22 = arith.subf %21, %19 : vector<16x64xf32>
    %23 = arith.mulf %22, %13 : vector<16x64xf32>
    %24 = arith.addf %20, %23 : vector<16x64xf32>
    %c0_15 = arith.constant 0 : index
    %c0_16 = arith.constant 0 : index
    %25 = vector.load %arg7[%c0_15, %c0_16] : memref<16x64xf32, #tpu.memory_space<vmem>>, vector<16x64xf32>
    tpu.vector_store %arg7[%c0_15, %c0_16], %24 {strides = array<i32>} : memref<16x64xf32, #tpu.memory_space<vmem>>, vector<16x64xf32>,
    return
  }
  func.func @transform_0(%arg0: i32) -> (i32, i32) {
    %c0_i32 = arith.constant 0 : i32
    %c0_i32_0 = arith.constant 0 : i32
    return %arg0, %c0_i32 : i32, i32
  }
  func.func @transform_1(%arg0: i32) -> (i32, i32) {
    %c0_i32 = arith.constant 0 : i32
    %c0_i32_0 = arith.constant 0 : i32
    return %arg0, %c0_i32 : i32, i32
  }
  func.func @transform_2(%arg0: i32) -> (i32, i32) {
    %c0_i32 = arith.constant 0 : i32
    %c0_i32_0 = arith.constant 0 : i32
    %c0_i32_1 = arith.constant 0 : i32
    return %c0_i32, %c0_i32_0 : i32, i32
  }
  func.func @transform_3(%arg0: i32) -> (i32, i32) {
    %c0_i32 = arith.constant 0 : i32
    %c0_i32_0 = arith.constant 0 : i32
    %c0_i32_1 = arith.constant 0 : i32
    return %c0_i32, %c0_i32_0 : i32, i32
  }
  func.func @transform_4(%arg0: i32) -> (i32, i32) {
    %c0_i32 = arith.constant 0 : i32
    %c0_i32_0 = arith.constant 0 : i32
    %c0_i32_1 = arith.constant 0 : i32
    return %c0_i32, %c0_i32_0 : i32, i32
  }
  func.func @transform_5(%arg0: i32) -> (i32, i32) {
    %c0_i32 = arith.constant 0 : i32
    %c0_i32_0 = arith.constant 0 : i32
    %c0_i32_1 = arith.constant 0 : i32
    return %c0_i32, %c0_i32_0 : i32, i32
  }
  func.func @transform_6(%arg0: i32) -> (i32, i32) {
    %c0_i32 = arith.constant 0 : i32
    %c0_i32_0 = arith.constant 0 : i32
    return %arg0, %c0_i32 : i32, i32
  }
}

</mosaic_0001>

<llo_original>
// kernel: tpu_custom_call.1
$region0: #{tpu_custom_call.1}
  #allocation0 [shape = 'u32[]', space=smem, size = 0x4, offset = 0x4, fixed_abs, tag = 'smem constant byte address 0x4 - core index']
  #allocation1 [shape = 'u32[144,128]{1,0:T(1,128)}', space=vmem, size = 0x12000, scoped, tag = 'internal scratch']
  %s0 = inlined_call_operand.hbm [shape: f32[16,32], index: 0, kind: input, shape index: {}]
  %s1 = inlined_call_operand.hbm [shape: f32[16,32], index: 1, kind: input, shape index: {}]
  %s2 = inlined_call_operand.hbm [shape: f32[32,128], index: 2, kind: input, shape index: {}]
  %s3 = inlined_call_operand.vmem [shape: f32[1,128], index: 3, kind: input, shape index: {}]
  %s4 = inlined_call_operand.hbm [shape: f32[32,64], index: 4, kind: input, shape index: {}]
  %s5 = inlined_call_operand.vmem [shape: f32[1,64], index: 5, kind: input, shape index: {}]
  %s6 = inlined_call_operand.hbm [shape: f32[16,64], index: 6, kind: output, shape index: {}]
  %s7 = sld [smem:[#allocation0]]
  $region50: #{tpu_custom_call.1} parent=0
    _
  %s9 = ssub.s32 1, %s7
  %s10 = scalar_select 0, %s9, %s7
  $region1: #{tpu_custom_call.1} parent=0
    #allocation2 [shape = 'u8[8192]{0}', space=vmem, size = 0x2000, scoped, tag = 'input window, operand 0, single buffered']
    #allocation3 [shape = 's32[1]{0}', space=sflag, size = 0x4, scoped, tag = 'scoped memory for tpu_custom_call.1']
    #allocation4 [shape = 's32[1]{0}', space=sflag, size = 0x4, scoped, tag = 'scoped memory for tpu_custom_call.1']
    #allocation5 [shape = 'u8[8192]{0}', space=vmem, size = 0x2000, scoped, tag = 'input window, operand 1, single buffered']
    #allocation6 [shape = 's32[1]{0}', space=sflag, size = 0x4, scoped, tag = 'scoped memory for tpu_custom_call.1']
    #allocation7 [shape = 'u8[16384]{0}', space=vmem, size = 0x4000, scoped, tag = 'input window, operand 2, single buffered']
    #allocation8 [shape = 'u8[16384]{0}', space=vmem, size = 0x4000, scoped, tag = 'input window, operand 4, single buffered']
    #allocation9 [shape = 's32[1]{0}', space=sflag, size = 0x4, scoped, tag = 'scoped memory for tpu_custom_call.1']
    #allocation10 [shape = 'u8[8192]{0}', space=vmem, size = 0x2000, scoped, tag = 'output window, operand 0, single buffered']
    %11 = vsyncpa [#allocation3], 0
    %12 = vsyncpa [#allocation6], 0
    %13 = vsyncpa [#allocation9], 0
    %14 = vsyncpa [#allocation4], 0
    // Predicated region
    $region2: #{tpu_custom_call.1} parent=1 // pred_check
      _
    $region3: #{tpu_custom_call.1} parent=1 // pred_check_branch
      %16 = sbr.rel (0) target = $region5
    $region4: #{tpu_custom_call.1} parent=1 // pred_region
      %s18 = ssub.s32 256, 256
      %19 = vsyncadd [#allocation3], %s18
      %s20 = sshll.u32 [#allocation2], 4
      %s21 = int_to_ptr.vmem [resolvable:$true] %s20
      %26 = dma.hbm_to_vmem [thread:$0]  %s0, 256, %s21, [#allocation3], 128, 128, 8
    $region5: #{tpu_custom_call.1} parent=1 // pred_fallthru
      _
    // Predicated region
    $region6: #{tpu_custom_call.1} parent=1 // pred_check
      _
    $region7: #{tpu_custom_call.1} parent=1 // pred_check_branch
      %28 = sbr.rel (0) target = $region9
    $region8: #{tpu_custom_call.1} parent=1 // pred_region
      %s30 = ssub.s32 256, 256
      %31 = vsyncadd [#allocation6], %s30
      %s32 = sshll.u32 [#allocation5], 4
      %s33 = int_to_ptr.vmem [resolvable:$true] %s32
      %38 = dma.hbm_to_vmem [thread:$0]  %s1, 256, %s33, [#allocation6], 128, 128, 8
    $region9: #{tpu_custom_call.1} parent=1 // pred_fallthru
      _
    // Predicated region
    $region10: #{tpu_custom_call.1} parent=1 // pred_check
      _
    $region11: #{tpu_custom_call.1} parent=1 // pred_check_branch
      %40 = sbr.rel (0) target = $region13
    $region12: #{tpu_custom_call.1} parent=1 // pred_region
      %s42 = ssub.s32 512, 512
      %43 = vsyncadd [#allocation6], %s42
      %s44 = sshll.u32 [#allocation7], 4
      %s45 = int_to_ptr.vmem [resolvable:$true] %s44
      %50 = dma.hbm_to_vmem [thread:$0]  %s2, 512, %s45, [#allocation6], 128, 128, 8
    $region13: #{tpu_custom_call.1} parent=1 // pred_fallthru
      _
    // Predicated region
    $region14: #{tpu_custom_call.1} parent=1 // pred_check
      _
    $region15: #{tpu_custom_call.1} parent=1 // pred_check_branch
      %52 = sbr.rel (0) target = $region17
    $region16: #{tpu_custom_call.1} parent=1 // pred_region
      _
    $region17: #{tpu_custom_call.1} parent=1 // pred_fallthru
      _
    // Predicated region
    $region18: #{tpu_custom_call.1} parent=1 // pred_check
      _
    $region19: #{tpu_custom_call.1} parent=1 // pred_check_branch
      %54 = sbr.rel (0) target = $region21
    $region20: #{tpu_custom_call.1} parent=1 // pred_region
      %s56 = ssub.s32 512, 512
      %57 = vsyncadd [#allocation9], %s56
      %s58 = sshll.u32 [#allocation8], 4
      %s59 = int_to_ptr.vmem [resolvable:$true] %s58
      %64 = dma.hbm_to_vmem [thread:$0]  %s4, 512, %s59, [#allocation9], 128, 128, 8
    $region21: #{tpu_custom_call.1} parent=1 // pred_fallthru
      _
    // Predicated region
    $region22: #{tpu_custom_call.1} parent=1 // pred_check
      _
    $region23: #{tpu_custom_call.1} parent=1 // pred_check_branch
      %66 = sbr.rel (0) target = $region25
    $region24: #{tpu_custom_call.1} parent=1 // pred_region
      _
    $region25: #{tpu_custom_call.1} parent=1 // pred_fallthru
      _
    // Predicated region
    $region26: #{tpu_custom_call.1} parent=1 // pred_check
      _
    $region27: #{tpu_custom_call.1} parent=1 // pred_check_branch
      %68 = sbr.rel (0) target = $region29
    $region28: #{tpu_custom_call.1} parent=1 // pred_region
      %69 = dma.done [#allocation3], 256
    $region29: #{tpu_custom_call.1} parent=1 // pred_fallthru
      _
    // Predicated region
    $region30: #{tpu_custom_call.1} parent=1 // pred_check
      _
    $region31: #{tpu_custom_call.1} parent=1 // pred_check_branch
      %71 = sbr.rel (0) target = $region33
    $region32: #{tpu_custom_call.1} parent=1 // pred_region
      %72 = dma.done [#allocation6], 256
    $region33: #{tpu_custom_call.1} parent=1 // pred_fallthru
      _
    // Predicated region
    $region34: #{tpu_custom_call.1} parent=1 // pred_check
      _
    $region35: #{tpu_custom_call.1} parent=1 // pred_check_branch
      %74 = sbr.rel (0) target = $region37
    $region36: #{tpu_custom_call.1} parent=1 // pred_region
      %75 = dma.done [#allocation6], 512
    $region37: #{tpu_custom_call.1} parent=1 // pred_fallthru
      _
    // Predicated region
    $region38: #{tpu_custom_call.1} parent=1 // pred_check
      _
    $region39: #{tpu_custom_call.1} parent=1 // pred_check_branch
      %77 = sbr.rel (0) target = $region41
    $region40: #{tpu_custom_call.1} parent=1 // pred_region
      %78 = dma.done [#allocation9], 512
    $region41: #{tpu_custom_call.1} parent=1 // pred_fallthru
      _
    %v79 = vld [vmem:[#allocation2] sm:$0xff]
    %v80 = vld [vmem:[#allocation2 + $0x8] sm:$0xff]
    %v81 = vld [vmem:[#allocation7] sm:$0xff]
    %v82 = vld [vmem:[#allocation7 + $0x8] sm:$0xff]
    %v83 = vld [vmem:[#allocation7 + $0x10] sm:$0xff]
    %v84 = vld [vmem:[#allocation7 + $0x18] sm:$0xff]
    %v85 = vld [vmem:[%s3] sm:$0x1]
    %v87 = vlaneseq
    %v88 = vshrl.u32 %v87, 7
    %v89 = vsub.s32 0, %v88
    %v90 = vrot.slane %v85, %v89
    %vm92 = vcmask 261120
    %v94 = vsel %vm92, %v79, 0
    %v97 = vsel %vm92, %v80, 0
    %99 = vmatprep.subr.mxu0 0.0
    %100 = vmatpush1.msra.mxu0 %v81
    %101 = vmatprep.subr.mxu0 0.0
    %102 = vmatpush1.msra.mxu0 %v82
    %103 = vmatprep.subr.mxu0 0.0
    %104 = vmatpush1.msra.mxu0 %v83
    %105 = vmatprep.subr.mxu0 0.0
    %106 = vmatpush1.msra.mxu0 %v84
    %107 = vmatprep.subr.mxu0 0.0
    %108 = vmatpush1.msra.mxu0 0.0
    %109 = vmatprep.subr.mxu0 0.0
    %110 = vmatpush1.msra.mxu0 0.0
    %111 = vmatprep.subr.mxu0 0.0
    %112 = vmatpush1.msra.mxu0 0.0
    %113 = vmatprep.subr.mxu0 0.0
    %114 = vmatpush1.msra.mxu0 0.0
    %115 = vmatprep.subr.mxu0 0.0
    %116 = vmatpush1.msra.mxu0 0.0
    %117 = vmatprep.subr.mxu0 0.0
    %118 = vmatpush1.msra.mxu0 0.0
    %119 = vmatprep.subr.mxu0 0.0
    %120 = vmatpush1.msra.mxu0 0.0
    %121 = vmatprep.subr.mxu0 0.0
    %122 = vmatpush1.msra.mxu0 0.0
    %123 = vmatprep.subr.mxu0 0.0
    %124 = vmatpush1.msra.mxu0 0.0
    %125 = vmatprep.subr.mxu0 0.0
    %126 = vmatpush1.msra.mxu0 0.0
    %127 = vmatprep.subr.mxu0 0.0
    %128 = vmatpush1.msra.mxu0 0.0
    %129 = vmatprep.subr.mxu0 0.0
    %130 = vmatpush1.msra.mxu0 0.0
    %131 = vmatprep.subr.mxu0 0.0
    %132 = vmatpush1.msra.mxu0 0.0
    %133 = vmatprep.subr.mxu0 0.0
    %134 = vmatpush1.msra.mxu0 0.0
    %135 = vmatprep.subr.mxu0 0.0
    %136 = vmatpush1.msra.mxu0 0.0
    %137 = vmatprep.subr.mxu0 0.0
    %138 = vmatpush1.msra.mxu0 0.0
    %139 = vmatprep.subr.mxu0 0.0
    %140 = vmatpush1.msra.mxu0 0.0
    %141 = vmatprep.subr.mxu0 0.0
    %142 = vmatpush1.msra.mxu0 0.0
    %143 = vmatprep.subr.mxu0 0.0
    %144 = vmatpush1.msra.mxu0 0.0
    %145 = vmatprep.subr.mxu0 0.0
    %146 = vmatpush1.msra.mxu0 0.0
    %147 = vmatprep.subr.mxu0 0.0
    %148 = vmatpush1.msra.mxu0 0.0
    %149 = vmatprep.subr.mxu0 0.0
    %150 = vmatpush1.msra.mxu0 0.0
    %151 = vmatprep.subr.mxu0 0.0
    %152 = vmatpush1.msra.mxu0 0.0
    %153 = vmatprep.subr.mxu0 0.0
    %154 = vmatpush1.msra.mxu0 0.0
    %155 = vmatprep.subr.mxu0 0.0
    %156 = vmatpush1.msra.mxu0 0.0
    %157 = vmatprep.subr.mxu0 0.0
    %158 = vmatpush1.msra.mxu0 0.0
    %159 = vmatprep.subr.mxu0 0.0
    %160 = vmatpush1.msra.mxu0 0.0
    %161 = vmatprep.subr.mxu0 0.0
    %162 = vmatpush1.msra.mxu0 0.0
    %163 = vmatprep.mubr.f32.mxu0 0.0
    %164 = vmatmul.mubr.f32.gmra.mrb[0].mxu0 %v94
    %v165 = vpop.f32.mrb[0].mxu0
    %v166 = vadd.f32 %v90, %v165
    %v167 = vpop.f32.mrb[0].mxu0
    %168 = vmatprep.mubr.f32.mxu0 0.0
    %169 = vmatmul.mubr.f32.gmra.mrb[0].mxu0 %v97
    %v170 = vpop.f32.mrb[0].mxu0
    %v171 = vadd.f32 %v90, %v170
    %v172 = vpop.f32.mrb[0].mxu0
    %173 = vdwg.mxu0
    %v174 = vld [vmem:[#allocation5] sm:$0xff]
    %v175 = vld [vmem:[#allocation5 + $0x8] sm:$0xff]
    %v176 = vld [vmem:[#allocation8] sm:$0xff]
    %v177 = vld [vmem:[#allocation8 + $0x8] sm:$0xff]
    %v178 = vld [vmem:[#allocation8 + $0x10] sm:$0xff]
    %v179 = vld [vmem:[#allocation8 + $0x18] sm:$0xff]
    %v180 = vld [vmem:[%s5] sm:$0x1]
    %v182 = vlaneseq
    %v183 = vshrl.u32 %v182, 7
    %v184 = vsub.s32 0, %v183
    %v185 = vrot.slane %v180, %v184
    %v188 = vsel %vm92, %v174, 0
    %v191 = vsel %vm92, %v175, 0
    %193 = vmatprep.subr.mxu0 0.0
    %194 = vmatpush1.msra.mxu0 %v176
    %195 = vmatprep.subr.mxu0 0.0
    %196 = vmatpush1.msra.mxu0 %v177
    %197 = vmatprep.subr.mxu0 0.0
    %198 = vmatpush1.msra.mxu0 %v178
    %199 = vmatprep.subr.mxu0 0.0
    %200 = vmatpush1.msra.mxu0 %v179
    %201 = vmatprep.subr.mxu0 0.0
    %202 = vmatpush1.msra.mxu0 0.0
    %203 = vmatprep.subr.mxu0 0.0
    %204 = vmatpush1.msra.mxu0 0.0
    %205 = vmatprep.subr.mxu0 0.0
    %206 = vmatpush1.msra.mxu0 0.0
    %207 = vmatprep.subr.mxu0 0.0
    %208 = vmatpush1.msra.mxu0 0.0
    %209 = vmatprep.subr.mxu0 0.0
    %210 = vmatpush1.msra.mxu0 0.0
    %211 = vmatprep.subr.mxu0 0.0
    %212 = vmatpush1.msra.mxu0 0.0
    %213 = vmatprep.subr.mxu0 0.0
    %214 = vmatpush1.msra.mxu0 0.0
    %215 = vmatprep.subr.mxu0 0.0
    %216 = vmatpush1.msra.mxu0 0.0
    %217 = vmatprep.subr.mxu0 0.0
    %218 = vmatpush1.msra.mxu0 0.0
    %219 = vmatprep.subr.mxu0 0.0
    %220 = vmatpush1.msra.mxu0 0.0
    %221 = vmatprep.subr.mxu0 0.0
    %222 = vmatpush1.msra.mxu0 0.0
    %223 = vmatprep.subr.mxu0 0.0
    %224 = vmatpush1.msra.mxu0 0.0
    %225 = vmatprep.subr.mxu0 0.0
    %226 = vmatpush1.msra.mxu0 0.0
    %227 = vmatprep.subr.mxu0 0.0
    %228 = vmatpush1.msra.mxu0 0.0
    %229 = vmatprep.subr.mxu0 0.0
    %230 = vmatpush1.msra.mxu0 0.0
    %231 = vmatprep.subr.mxu0 0.0
    %232 = vmatpush1.msra.mxu0 0.0
    %233 = vmatprep.subr.mxu0 0.0
    %234 = vmatpush1.msra.mxu0 0.0
    %235 = vmatprep.subr.mxu0 0.0
    %236 = vmatpush1.msra.mxu0 0.0
    %237 = vmatprep.subr.mxu0 0.0
    %238 = vmatpush1.msra.mxu0 0.0
    %239 = vmatprep.subr.mxu0 0.0
    %240 = vmatpush1.msra.mxu0 0.0
    %241 = vmatprep.subr.mxu0 0.0
    %242 = vmatpush1.msra.mxu0 0.0
    %243 = vmatprep.subr.mxu0 0.0
    %244 = vmatpush1.msra.mxu0 0.0
    %245 = vmatprep.subr.mxu0 0.0
    %246 = vmatpush1.msra.mxu0 0.0
    %247 = vmatprep.subr.mxu0 0.0
    %248 = vmatpush1.msra.mxu0 0.0
    %249 = vmatprep.subr.mxu0 0.0
    %250 = vmatpush1.msra.mxu0 0.0
    %251 = vmatprep.subr.mxu0 0.0
    %252 = vmatpush1.msra.mxu0 0.0
    %253 = vmatprep.subr.mxu0 0.0
    %254 = vmatpush1.msra.mxu0 0.0
    %255 = vmatprep.subr.mxu0 0.0
    %256 = vmatpush1.msra.mxu0 0.0
    %257 = vmatprep.mubr.f32.mxu0 0.0
    %258 = vmatmul.mubr.f32.gmra.mrb[0].mxu0 %v188
    %v259 = vpop.f32.mrb[0].mxu0
    %v260 = vadd.f32 %v185, %v259
    %v261 = vpop.f32.mrb[0].mxu0
    %262 = vmatprep.mubr.f32.mxu0 0.0
    %263 = vmatmul.mubr.f32.gmra.mrb[0].mxu0 %v191
    %v264 = vpop.f32.mrb[0].mxu0
    %v265 = vadd.f32 %v185, %v264
    %v266 = vpop.f32.mrb[0].mxu0
    %267 = vdwg.mxu0
    %v268 = vsub.f32 0.0, %v166
    %v269 = vsub.f32 0.0, %v171
    %v270 = vmul.f32 %v268, 1.442695
    %v271 = vpow.pop %v270
    %v272 = vmul.f32 %v269, 1.442695
    %v273 = vpow.pop %v272
    %v274 = vadd.f32 %v271, 1.0
    %v275 = vadd.f32 %v273, 1.0
    %v276 = vrcp.pop %v274
    %v277 = vrcp.pop %v275
    %280 = vrot.lane.b32.xlu0 %v166, 64
    %v281 = vpop.permute.xlu0 %280
    %282 = vrot.lane.b32.xlu0 %v171, 64
    %v283 = vpop.permute.xlu0 %282
    %v286 = vmul.f32 %v276, %v281
    %v287 = vmul.f32 %v277, %v283
    %v288 = vsub.f32 1.0, %v276
    %v289 = vsub.f32 1.0, %v277
    %v290 = vmul.f32 %v288, %v260
    %v291 = vmul.f32 %v289, %v265
    %v292 = vadd.f32 %v286, %v290
    %v293 = vadd.f32 %v287, %v291
    %vm294 = vcmask 523264
    %295 = vst.msk [vmem:[#allocation10] sm:$0xff] %vm294, %v292
    %296 = vst.msk [vmem:[#allocation10 + $0x8] sm:$0xff] %vm294, %v293
    // Predicated region
    $region42: #{tpu_custom_call.1} parent=1 // pred_check
      _
    $region43: #{tpu_custom_call.1} parent=1 // pred_check_branch
      %298 = sbr.rel (0) target = $region45
    $region44: #{tpu_custom_call.1} parent=1 // pred_region
      %s300 = ssub.s32 256, 256
      %301 = vsyncadd [#allocation4], %s300
      %s302 = sshll.u32 [#allocation10], 4
      %s303 = int_to_ptr.vmem [resolvable:$true] %s302
      %308 = dma.vmem_to_hbm [thread:$0]  %s303, 256, %s6, [#allocation4], 128, 128, 8
    $region45: #{tpu_custom_call.1} parent=1 // pred_fallthru
      _
    // Predicated region
    $region46: #{tpu_custom_call.1} parent=1 // pred_check
      _
    $region47: #{tpu_custom_call.1} parent=1 // pred_check_branch
      %310 = sbr.rel (0) target = $region49
    $region48: #{tpu_custom_call.1} parent=1 // pred_region
      %311 = dma.done [#allocation4], 256
    $region49: #{tpu_custom_call.1} parent=1 // pred_fallthru
      _
    %312 = vsyncpa [#allocation3], 1
    %313 = vsyncpa [#allocation6], 1
    %314 = vsyncpa [#allocation9], 1
    %315 = vsyncpa [#allocation4], 1

</llo_original>
